<compile_context>
chip_gen: v7x
topology: tpu7x:2x2x1
jax: 0.10.0
libtpu: 0.0.40
codegen_flags: <defaults>
</compile_context>

<pallas_src>
import jax
import jax.numpy as jnp
from jax.experimental import pallas as pl
from jax.experimental.pallas import tpu as pltpu


def _dup_kernel(x_ref, o_ref):
    # x_ref: (Nb, 1, Lb)   o_ref: (Nb, factor, Lb)
    # Read the slab tile once and store it `factor` times (middle-axis
    # broadcast -> repeated full-width lane-dense stores, no cross-lane work).
    o_ref[...] = jnp.broadcast_to(x_ref[...], o_ref.shape)


def _vmem_capacity_bytes():
    """Physical VMEM of the current TPU generation (conservative fallback)."""
    try:
        return int(pltpu.get_tpu_info().vmem_capacity_bytes)
    except Exception:
        return 64 * 1024 * 1024  # v7x-sized fallback: safe on every generation


def _choose_blocks(N, L, itemsize, factor):
    """Pick (batch block Nb, lane block Lb, vmem capacity)."""
    cap = _vmem_capacity_bytes()
    # Use about half of physical VMEM for the pipelined blocks; each element of
    # the lane axis costs (input + factor*output), double-buffered.
    budget = cap // 2
    per_elem = 2 * (1 + factor) * itemsize

    # --- lane-axis block: full slab if it fits, else a multiple of 128 ---
    max_lb = max(128, ((budget // per_elem) // 128) * 128)
    lb = L if L <= max_lb else max_lb

    # --- batch block: give each grid step enough work when slabs are tiny ---
    nb = 1
    if lb == L:
        step_bytes = (1 + factor) * L * itemsize
        min_step = 1 << 20  # ~1 MiB of HBM traffic per grid step
        if step_bytes < min_step:
            nb = min(N, max(1, min_step // max(1, step_bytes)))
            # never exceed the VMEM budget
            nb = min(nb, max(1, budget // max(1, per_elem * L)))

    # --- keep >= 2 blocks on a parallel axis so v7x can use both TensorCores ---
    if pl.cdiv(N, nb) * pl.cdiv(L, lb) < 2:
        if N >= 2:
            nb = pl.cdiv(N, 2)
        elif L >= 256:
            half = ((pl.cdiv(L, 2) + 127) // 128) * 128
            if 128 <= half < L:
                lb = half

    return nb, lb, cap


def channel_duplication(x, factor: int):
    """Pallas equivalent of torch.cat([x] * factor, dim=1) for NCHW input."""
    N, C, H, W = x.shape
    L = C * H * W
    itemsize = jnp.dtype(x.dtype).itemsize
    nb, lb, cap = _choose_blocks(N, L, itemsize, factor)

    # Per-sample slab, lane-dense last dim; middle dim of 1 keeps the block's
    # second-to-last dim equal to the full array dim (always legal).
    x3 = x.reshape(N, 1, L)

    footprint = 2 * (1 + factor) * nb * lb * itemsize  # double-buffered blocks
    vmem_limit = int(min(cap, max(32 * 1024 * 1024, footprint + (8 << 20))))

    out = pl.pallas_call(
        _dup_kernel,
        out_shape=jax.ShapeDtypeStruct((N, factor, L), x.dtype),
        grid=(pl.cdiv(N, nb), pl.cdiv(L, lb)),
        in_specs=[
            pl.BlockSpec((nb, 1, lb), lambda n, l: (n, 0, l)),
        ],
        out_specs=pl.BlockSpec(
            # Kernel sees all `factor` copies of this slab slice -> each input
            # tile is read from HBM exactly once.
            (nb, factor, lb), lambda n, l: (n, 0, l)
        ),
        compiler_params=pltpu.CompilerParams(
            dimension_semantics=("parallel", "parallel"),
            vmem_limit_bytes=vmem_limit,
        ),
        cost_estimate=pl.CostEstimate(
            flops=0,
            transcendentals=0,
            bytes_accessed=(1 + factor) * x.size * itemsize,
        ),
    )(x3)

    # (N, factor, L) -> (N, factor*C, H, W): free row-major reshape giving
    # exactly torch.cat's channel ordering.
    return out.reshape(N, factor * C, H, W)


if __name__ == "__main__":
    key = jax.random.PRNGKey(0)

    # Primary check: shape implied by the module (batch=2, channels=4, 16x16).
    factor = 2
    x = jax.random.normal(key, (2, 4, 16, 16), dtype=jnp.float32)
    out = jax.block_until_ready(channel_duplication(x, factor))
    ref = jnp.concatenate([x] * factor, axis=1)
    assert out.shape == ref.shape, (out.shape, ref.shape)
    assert out.dtype == ref.dtype
    assert jnp.array_equal(out, ref)

    # Robustness check: non-128-multiple slab (3*7*7 = 147 lanes), factor=3.
    key2 = jax.random.PRNGKey(1)
    x2 = jax.random.normal(key2, (2, 3, 7, 7), dtype=jnp.float32)
    out2 = jax.block_until_ready(channel_duplication(x2, 3))
    ref2 = jnp.concatenate([x2] * 3, axis=1)
    assert out2.shape == ref2.shape
    assert jnp.array_equal(out2, ref2)

    print("KERNEL_OK")
</pallas_src>

<mosaic_0001>
module attributes {stable_mosaic.version = 11 : i64} {
  func.func @_dup_kernel(%arg0: i32, %arg1: i32, %arg2: memref<1x1x1024xf32, #tpu.memory_space<vmem>>, %arg3: memref<1x2x1024xf32, #tpu.memory_space<vmem>>) attributes {dimension_semantics = [#tpu.dimension_semantics<parallel>, #tpu.dimension_semantics<parallel>], iteration_bounds = array<i64: 2, 1>, scalar_prefetch = 0 : i64, scratch_operands = 0 : i64, tpu.core_type = #tpu.core_type<tc>, window_params = [{transform_indices = @transform_0, window_bounds = array<i64: 1, 1, 1024>}, {transform_indices = @transform_1, window_bounds = array<i64: 1, 2, 1024>}]} {
    %c0 = arith.constant 0 : index
    %c0_0 = arith.constant 0 : index
    %c0_1 = arith.constant 0 : index
    %0 = vector.load %arg2[%c0, %c0_0, %c0_1] : memref<1x1x1024xf32, #tpu.memory_space<vmem>>, vector<1x1x1024xf32>
    %1 = vector.shape_cast %0 : vector<1x1x1024xf32> to vector<1x1x1024xf32>
    %2 = vector.broadcast %1 : vector<1x1x1024xf32> to vector<1x2x1024xf32>
    %c0_2 = arith.constant 0 : index
    %c0_3 = arith.constant 0 : index
    %c0_4 = arith.constant 0 : index
    %3 = vector.load %arg3[%c0_2, %c0_3, %c0_4] : memref<1x2x1024xf32, #tpu.memory_space<vmem>>, vector<1x2x1024xf32>
    tpu.vector_store %arg3[%c0_2, %c0_3, %c0_4], %2 {strides = array<i32>} : memref<1x2x1024xf32, #tpu.memory_space<vmem>>, vector<1x2x1024xf32>,
    return
  }
  func.func @transform_0(%arg0: i32, %arg1: i32) -> (i32, i32, i32) {
    %c0_i32 = arith.constant 0 : i32
    %c0_i32_0 = arith.constant 0 : i32
    return %arg0, %c0_i32, %arg1 : i32, i32, i32
  }
  func.func @transform_1(%arg0: i32, %arg1: i32) -> (i32, i32, i32) {
    %c0_i32 = arith.constant 0 : i32
    %c0_i32_0 = arith.constant 0 : i32
    return %arg0, %c0_i32, %arg1 : i32, i32, i32
  }
}

</mosaic_0001>

<llo_original>
// kernel: tpu_custom_call.1
$region0: #{tpu_custom_call.1}
  #allocation0 [shape = 'u32[]', space=smem, size = 0x4, offset = 0x4, fixed_abs, tag = 'smem constant byte address 0x4 - core index']
  #allocation1 [shape = 'u32[144,128]{1,0:T(1,128)}', space=vmem, size = 0x12000, scoped, tag = 'internal scratch']
  %s0 = inlined_call_operand.hbm [shape: f32[2,1,1024], index: 0, kind: input, shape index: {}]
  %s1 = inlined_call_operand.hbm [shape: f32[2,2,1024], index: 1, kind: output, shape index: {}]
  %s2 = sld [smem:[#allocation0]]
  $region41: #{tpu_custom_call.1} parent=0
    _
  %s4 = ssub.s32 1, %s2
  %s5 = scalar_select 0, %s4, %s2
  $region1: #{tpu_custom_call.1} parent=0
    #allocation2 [shape = 'u8[8192]{0}', space=vmem, size = 0x2000, scoped, tag = 'input window, operand 0']
    #allocation3 [shape = 's32[2]{0}', space=sflag, size = 0x8, scoped, tag = 'scoped memory for tpu_custom_call.1']
    #allocation4 [shape = 's32[2]{0}', space=sflag, size = 0x8, scoped, tag = 'scoped memory for tpu_custom_call.1']
    #allocation5 [shape = 'u8[16384]{0}', space=vmem, size = 0x4000, scoped, tag = 'output window, operand 0']
    %6 = vsyncpa [#allocation3], 0
    %s7 = scalar_lea.sflag [#allocation3], 1
    %8 = vsyncpa %s7, 0
    %9 = vsyncpa [#allocation4], 0
    %s10 = scalar_lea.sflag [#allocation4], 1
    %11 = vsyncpa %s10, 0
    loop: start=0, step=1, limit=4
    $region2: #{tpu_custom_call.1} parent=1 // loop_pre_header
      _
    $region3: #{tpu_custom_call.1} parent=1 // loop_header
      %s13 = sphi 0, %s17
      %p14 = scmp.ge.s32.totalorder %s13, 4
      %s20 = sphi 0, %s32
      %s21 = sphi 0, %s28
      %s22 = sphi 0, %s20
      %s23 = sphi 0, %s21
      %s24 = sphi 0, %s22
      %s25 = sphi 0, %s23
      %s37 = sphi 0, %s39
      %s40 = sphi 0, %s37
      %s41 = sphi 0, %s40
      %s57 = sphi 0, %s41
      %s65 = sphi 0, %s67
      %s68 = sphi 0, %s65
      %s69 = sphi 0, %s68
      %s85 = sphi 0, %s69
    $region4: #{tpu_custom_call.1} parent=1 // loop_header_branch
      %16 = sbr.rel (%p14) target = $region8
    $region5: #{tpu_custom_call.1} parent=1 // loop_body
      %s18 = ssub.s32 %s13, 1
      %s19 = ssub.s32 %s13, 2
      %s26 = sadd.s32 1, %s21
      %p27 = scmp.ge.s32.totalorder %s26, 1
      %s28 = scalar_select %p27, 0, %s26
      %s29 = sadd.s32 1, %s20
      %s30 = scalar_select %p27, %s29, %s20
      %p31 = scmp.ge.s32.totalorder %s30, 2
      %s32 = scalar_select %p31, 0, %s30
      %s33 = ssub.s32 %s20, %s32
      %s34 = ssub.s32 %s21, %s28
      %s35 = sor.u32 %s33, %s34
      %p36 = scmp.eq.s32.totalorder %s35, 0
      %s38 = sadd.s32 %s37, 1
      %s39 = scalar_select %p36, %s37, %s38
      %p42 = pneg %p36
      %p43 = scmp.eq.s32.totalorder %s13, 1
      %p44 = por %p42, %p43
      %p45 = scmp.ne.s32.totalorder %s37, %s40
      %p46 = scmp.eq.s32.totalorder %s13, 0
      %p47 = por %p45, %p46
      %p48 = scmp.ne.s32.totalorder %s37, %s40
      %p49 = scmp.eq.s32.totalorder %s18, 1
      %p50 = por %p48, %p49
      %p51 = scmp.ne.s32.totalorder %s40, %s41
      %p52 = scmp.eq.s32.totalorder %s18, 0
      %p53 = por %p51, %p52
      %p54 = scmp.ne.s32.totalorder %s40, %s41
      %p55 = scmp.eq.s32.totalorder %s19, 1
      %p56 = por %p54, %p55
      %p58 = scmp.ne.s32.totalorder %s41, %s57
      %p59 = scmp.eq.s32.totalorder %s19, 0
      %p60 = por %p58, %p59
      %s61 = ssub.s32 %s20, %s32
      %s62 = ssub.s32 %s21, %s28
      %s63 = sor.u32 %s61, %s62
      %p64 = scmp.eq.s32.totalorder %s63, 0
      %s66 = sadd.s32 %s65, 1
      %s67 = scalar_select %p64, %s65, %s66
      %p70 = pneg %p64
      %p71 = scmp.eq.s32.totalorder %s13, 1
      %p72 = por %p70, %p71
      %p73 = scmp.ne.s32.totalorder %s65, %s68
      %p74 = scmp.eq.s32.totalorder %s13, 0
      %p75 = por %p73, %p74
      %p76 = scmp.ne.s32.totalorder %s65, %s68
      %p77 = scmp.eq.s32.totalorder %s18, 1
      %p78 = por %p76, %p77
      %p79 = scmp.ne.s32.totalorder %s68, %s69
      %p80 = scmp.eq.s32.totalorder %s18, 0
      %p81 = por %p79, %p80
      %p82 = scmp.ne.s32.totalorder %s68, %s69
      %p83 = scmp.eq.s32.totalorder %s19, 1
      %p84 = por %p82, %p83
      %p86 = scmp.ne.s32.totalorder %s69, %s85
      %p87 = scmp.eq.s32.totalorder %s19, 0
      %p88 = por %p86, %p87
      %p89 = scmp.le.s32.totalorder 1, %s13
      %p90 = scmp.lt.s32.totalorder %s13, 3
      %p91 = pnand %p89, %p90
      %p92 = pneg %p91
      // Predicated region
      $region9: #{tpu_custom_call.1} parent=5 // pred_check
        _
      $region10: #{tpu_custom_call.1} parent=5 // pred_check_branch
        %94 = sbr.rel (%p91) target = $region12
      $region11: #{tpu_custom_call.1} parent=5 // pred_region
        %s95 = ssub.s32 %s13, 1
      $region12: #{tpu_custom_call.1} parent=5 // pred_fallthru
        _
      %p96 = scmp.lt.s32.totalorder %s13, 2
      // Predicated region
      $region13: #{tpu_custom_call.1} parent=5 // pred_check
        %p97 = pneg %p96
      $region14: #{tpu_custom_call.1} parent=5 // pred_check_branch
        %99 = sbr.rel (%p97) target = $region16
      $region15: #{tpu_custom_call.1} parent=5 // pred_region
        // Predicated region
        $region17: #{tpu_custom_call.1} parent=15 // pred_check
          %p100 = pneg %p47
        $region18: #{tpu_custom_call.1} parent=15 // pred_check_branch
          %102 = sbr.rel (%p100) target = $region20
        $region19: #{tpu_custom_call.1} parent=15 // pred_region
          %s103 = sand.u32 %s37, 1
          %s104 = scalar_lea.sflag [#allocation3], %s103
          %s105 = sand.u32 %s37, 1
          %s106 = smul.addr %s105, 8
          %s107 = scalar_lea.vmem [#allocation2], %s106
          %s108 = smul.u32 8, %s21
          %s110 = ssub.s32 128, 128
          %111 = vsyncadd %s104, %s110
          %s112 = smul.addr %s20, 8
          %s113 = sadd.s32 %s108, %s112
          %s114 = smul.addr %s113, 16
          %s115 = scalar_lea.hbm %s0, %s114
          %s117 = sshll.u32 %s107, 4
          %s118 = int_to_ptr.vmem [resolvable:$true] %s117
          %120 = dma.hbm_to_vmem [thread:$0]  %s115, 128, %s118, %s104
        $region20: #{tpu_custom_call.1} parent=15 // pred_fallthru
          _
      $region16: #{tpu_custom_call.1} parent=5 // pred_fallthru
        _
      %p121 = scmp.le.s32.totalorder 1, %s13
      %p122 = scmp.lt.s32.totalorder %s13, 3
      %p123 = pnand %p121, %p122
      %p124 = pneg %p123
      // Predicated region
      $region21: #{tpu_custom_call.1} parent=5 // pred_check
        _
      $region22: #{tpu_custom_call.1} parent=5 // pred_check_branch
        %126 = sbr.rel (%p123) target = $region24
      $region23: #{tpu_custom_call.1} parent=5 // pred_region
        %s127 = ssub.s32 %s13, 1
        %s128 = sand.u32 %s40, 1
        %s129 = scalar_lea.sflag [#allocation3], %s128
        %s130 = sand.u32 %s40, 1
        %s131 = smul.addr %s130, 8
        %s132 = scalar_lea.vmem [#allocation2], %s131
        // Predicated region
        $region25: #{tpu_custom_call.1} parent=23 // pred_check
          %p133 = pneg %p53
        $region26: #{tpu_custom_call.1} parent=23 // pred_check_branch
          %135 = sbr.rel (%p133) target = $region28
        $region27: #{tpu_custom_call.1} parent=23 // pred_region
          %136 = dma.done %s129, 128
        $region28: #{tpu_custom_call.1} parent=23 // pred_fallthru
          _
        %s137 = sand.u32 %s40, 1
        %s138 = scalar_lea.sflag [#allocation3], %s137
        %s139 = sand.u32 %s40, 1
        %s140 = smul.addr %s139, 8
        %s141 = scalar_lea.vmem [#allocation2], %s140
        %p142 = pneg %p53
        %p143 = pneg %p50
        %p144 = pneg %p81
        %p145 = pneg %p78
        %s146 = sand.u32 %s68, 1
        %s147 = scalar_lea.sflag [#allocation4], %s146
        %s148 = sand.u32 %s68, 1
        %s149 = smul.addr %s148, 16
        %s150 = scalar_lea.vmem [#allocation5], %s149
        %s151 = smul.u32 8, %s23
        %s152 = smul.u32 8, %s23
        %v153 = vld [vmem:[%s132] sm:$0xff]
        %v155 = vlaneseq
        %v156 = vshrl.u32 %v155, 7
        %v157 = vsub.s32 0, %v156
        %v158 = vrot.slane %v153, %v157
        %v159 = vlaneseq
        %v160 = vshrl.u32 %v159, 7
        %v161 = vsub.s32 1, %v160
        %v162 = vrot.slane %v153, %v161
        %v163 = vlaneseq
        %v164 = vshrl.u32 %v163, 7
        %v165 = vsub.s32 2, %v164
        %v166 = vrot.slane %v153, %v165
        %v167 = vlaneseq
        %v168 = vshrl.u32 %v167, 7
        %v169 = vsub.s32 3, %v168
        %v170 = vrot.slane %v153, %v169
        %v171 = vlaneseq
        %v172 = vshrl.u32 %v171, 7
        %v173 = vsub.s32 4, %v172
        %v174 = vrot.slane %v153, %v173
        %v175 = vlaneseq
        %v176 = vshrl.u32 %v175, 7
        %v177 = vsub.s32 5, %v176
        %v178 = vrot.slane %v153, %v177
        %v179 = vlaneseq
        %v180 = vshrl.u32 %v179, 7
        %v181 = vsub.s32 6, %v180
        %v182 = vrot.slane %v153, %v181
        %v183 = vlaneseq
        %v184 = vshrl.u32 %v183, 7
        %v185 = vsub.s32 7, %v184
        %v186 = vrot.slane %v153, %v185
        %v187 = vcombine.low %v158, %v162
        %v188 = vcombine.low %v166, %v170
        %v190 = vunpack.c.l.s4 1983009808
        %v191 = vunpack.c.0.s8 %v190
        %v192 = vlaneseq
        %v193 = vshrl.u32 %v192, 7
        %v194 = vsub.s32 %v191, %v193
        %v195 = vrot.slane %v187, %v194
        %v197 = vunpack.c.l.s4 1983009808
        %v198 = vunpack.c.0.s8 %v197
        %v199 = vlaneseq
        %v200 = vshrl.u32 %v199, 7
        %v201 = vsub.s32 %v198, %v200
        %v202 = vrot.slane %v188, %v201
        %v203 = vcombine.low %v195, %v202
        %v204 = vcombine.low %v174, %v178
        %v205 = vcombine.low %v182, %v186
        %v207 = vunpack.c.l.s4 1983009808
        %v208 = vunpack.c.0.s8 %v207
        %v209 = vlaneseq
        %v210 = vshrl.u32 %v209, 7
        %v211 = vsub.s32 %v208, %v210
        %v212 = vrot.slane %v204, %v211
        %v214 = vunpack.c.l.s4 1983009808
        %v215 = vunpack.c.0.s8 %v214
        %v216 = vlaneseq
        %v217 = vshrl.u32 %v216, 7
        %v218 = vsub.s32 %v215, %v217
        %v219 = vrot.slane %v205, %v218
        %v220 = vcombine.low %v212, %v219
        %223 = vst [vmem:[%s150] sm:$0xff] %v203
        %224 = vst [vmem:[%s150 + $0x8] sm:$0xff] %v220
        %s225 = sand.u32 %s68, 1
        %s226 = scalar_lea.sflag [#allocation4], %s225
        %s227 = sand.u32 %s68, 1
        %s228 = smul.addr %s227, 16
        %s229 = scalar_lea.vmem [#allocation5], %s228
        // Predicated region
        $region29: #{tpu_custom_call.1} parent=23 // pred_check
          %p230 = pneg %p78
        $region30: #{tpu_custom_call.1} parent=23 // pred_check_branch
          %232 = sbr.rel (%p230) target = $region32
        $region31: #{tpu_custom_call.1} parent=23 // pred_region
          %s233 = smul.u32 8, %s23
          %s235 = ssub.s32 256, 256
          %236 = vsyncadd %s226, %s235
          %s237 = smul.addr %s22, 8
          %s238 = sadd.s32 %s233, %s237
          %s239 = smul.addr %s238, 32
          %s240 = scalar_lea.hbm %s1, %s239
          %s242 = sshll.u32 %s229, 4
          %s243 = int_to_ptr.vmem [resolvable:$true] %s242
          %245 = dma.vmem_to_hbm [thread:$0]  %s243, 256, %s240, %s226
        $region32: #{tpu_custom_call.1} parent=23 // pred_fallthru
          _
      $region24: #{tpu_custom_call.1} parent=5 // pred_fallthru
        _
      %p246 = scmp.le.s32.totalorder 2, %s13
      // Predicated region
      $region33: #{tpu_custom_call.1} parent=5 // pred_check
        %p247 = pneg %p246
      $region34: #{tpu_custom_call.1} parent=5 // pred_check_branch
        %249 = sbr.rel (%p247) target = $region36
      $region35: #{tpu_custom_call.1} parent=5 // pred_region
        %s250 = ssub.s32 %s13, 2
        // Predicated region
        $region37: #{tpu_custom_call.1} parent=35 // pred_check
          %p251 = pneg %p84
        $region38: #{tpu_custom_call.1} parent=35 // pred_check_branch
          %253 = sbr.rel (%p251) target = $region40
        $region39: #{tpu_custom_call.1} parent=35 // pred_region
          %s254 = sand.u32 %s69, 1
          %s255 = scalar_lea.sflag [#allocation4], %s254
          %s256 = sand.u32 %s69, 1
          %s257 = smul.addr %s256, 16
          %s258 = scalar_lea.vmem [#allocation5], %s257
          %259 = dma.done %s255, 256
        $region40: #{tpu_custom_call.1} parent=35 // pred_fallthru
          _
      $region36: #{tpu_custom_call.1} parent=5 // pred_fallthru
        _
    $region6: #{tpu_custom_call.1} parent=1 // loop_footer
      %s17 = sadd.s32 1, %s13
    $region7: #{tpu_custom_call.1} parent=1 // loop_footer_branch
      %12 = sbr.rel target = $region3
    $region8: #{tpu_custom_call.1} parent=1 // loop_exit
      _
    %260 = vsyncpa [#allocation3], 1
    %s261 = scalar_lea.sflag [#allocation3], 1
    %262 = vsyncpa %s261, 1
    %263 = vsyncpa [#allocation4], 1
    %s264 = scalar_lea.sflag [#allocation4], 1
    %265 = vsyncpa %s264, 1

</llo_original>
